<compile_context>
chip_gen: v7x
topology: tpu7x:2x2x1
jax: 0.10.0
libtpu: 0.0.40
codegen_flags: <defaults>
</compile_context>

<pallas_src>
import math
import numpy as np

import jax
import jax.numpy as jnp
from jax.experimental import pallas as pl
from jax.experimental.pallas import tpu as pltpu


# ----------------------------- Pallas kernel -----------------------------

def _make_conv_bn_act_kernel(T, K, apply_tanh):
    """conv1d(k=K, pad already applied) + folded-BN affine + optional tanh."""

    def kernel(x_ref, w_ref, scale_ref, shift_ref, o_ref):
        # x_ref:     (1, T + K - 1, Cin)   zero-padded input slab for this batch elem
        # w_ref:     (K, Cin, TILE_CO)     conv taps
        # scale_ref: (1, TILE_CO)          folded BN scale  (gamma / sqrt(var+eps))
        # shift_ref: (1, TILE_CO)          folded BN shift  (beta + (b_conv-mean)*scale)
        # o_ref:     (1, T, TILE_CO)
        x = x_ref[0]                                   # (T+K-1, Cin)
        tile_co = w_ref.shape[2]
        acc = jnp.zeros((T, tile_co), jnp.float32)
        for k in range(K):                             # static unroll, K = 5
            acc = acc + jnp.dot(x[k:k + T, :], w_ref[k],
                                preferred_element_type=jnp.float32)
        y = acc * scale_ref[...] + shift_ref[...]      # fused per-channel affine
        if apply_tanh:
            y = jnp.tanh(y)                            # EUP, overlaps MXU
        o_ref[0] = y.astype(o_ref.dtype)

    return kernel


def _pick_tile_co(cout):
    for t in (256, 128):
        if cout % t == 0:
            return t
    return cout  # small channel counts (e.g. 80 mels) -> full dim (allowed)


def conv_bn_act_pallas(xp, w, scale, shift, T, apply_tanh):
    """xp: (B, T+K-1, Cin) zero-padded; w: (K, Cin, Cout); scale/shift: (1, Cout)."""
    B, Tpad, Cin = xp.shape
    K, _, Cout = w.shape
    tile_co = _pick_tile_co(Cout)
    kernel = _make_conv_bn_act_kernel(T, K, apply_tanh)
    return pl.pallas_call(
        kernel,
        out_shape=jax.ShapeDtypeStruct((B, T, Cout), jnp.float32),
        grid=(B, Cout // tile_co),
        in_specs=[
            # x slab stays resident across the inner (Cout-tile) grid axis
            pl.BlockSpec((1, Tpad, Cin), lambda b, j: (b, 0, 0)),
            pl.BlockSpec((K, Cin, tile_co), lambda b, j: (0, 0, j)),
            pl.BlockSpec((1, tile_co), lambda b, j: (0, j)),
            pl.BlockSpec((1, tile_co), lambda b, j: (0, j)),
        ],
        out_specs=pl.BlockSpec((1, T, tile_co), lambda b, j: (b, 0, j)),
        compiler_params=pltpu.CompilerParams(
            dimension_semantics=("parallel", "parallel")),
    )(xp, w, scale, shift)


def conv_bn_act_ref(xp, w, scale, shift, T, apply_tanh):
    """Pure-JAX reference for the same math (correctness check only)."""
    K = w.shape[0]
    acc = jnp.zeros((xp.shape[0], T, w.shape[2]), jnp.float32)
    for k in range(K):
        acc = acc + jnp.einsum('btc,cd->btd', xp[:, k:k + T, :], w[k],
                               precision=jax.lax.Precision.HIGHEST)
    y = acc * scale + shift
    if apply_tanh:
        y = jnp.tanh(y)
    return y


# ----------------------------- PostNet module (host wrapper) -----------------------------

class PostNetPallas:
    """Five 1-d convolutions (512 channels, kernel 5) + BatchNorm + tanh (except last)."""

    def __init__(self, key, n_mel_channels=80, postnet_embedding_dim=512,
                 postnet_kernel_size=5, postnet_n_convolutions=5, bn_eps=1e-5):
        assert postnet_kernel_size % 2 == 1
        self.K = postnet_kernel_size
        self.pad = (postnet_kernel_size - 1) // 2

        # layer channel plan: mel -> emb -> ... -> emb -> mel
        cins = [n_mel_channels] + [postnet_embedding_dim] * (postnet_n_convolutions - 1)
        couts = [postnet_embedding_dim] * (postnet_n_convolutions - 1) + [n_mel_channels]

        self.layers = []
        keys = jax.random.split(key, postnet_n_convolutions * 6)
        for i, (cin, cout) in enumerate(zip(cins, couts)):
            k_w, k_b, k_g, k_be, k_m, k_v = keys[6 * i:6 * i + 6]
            # conv weight (PyTorch layout (Cout, Cin, K) -> ours (K, Cin, Cout))
            w = jax.random.normal(k_w, (self.K, cin, cout), jnp.float32)
            w = w * (1.0 / math.sqrt(cin * self.K))
            b_conv = 0.1 * jax.random.normal(k_b, (cout,), jnp.float32)
            # BatchNorm1d eval-mode parameters (running stats)
            gamma = 1.0 + 0.1 * jax.random.normal(k_g, (cout,), jnp.float32)
            beta = 0.1 * jax.random.normal(k_be, (cout,), jnp.float32)
            run_mean = 0.1 * jax.random.normal(k_m, (cout,), jnp.float32)
            run_var = 0.5 + 0.5 * jnp.abs(jax.random.normal(k_v, (cout,), jnp.float32))
            # fold BN + conv bias into a single per-channel affine
            inv_std = 1.0 / jnp.sqrt(run_var + bn_eps)
            scale = (gamma * inv_std).reshape(1, cout)
            shift = (beta + (b_conv - run_mean) * gamma * inv_std).reshape(1, cout)
            apply_tanh = i < postnet_n_convolutions - 1
            self.layers.append((w, scale, shift, apply_tanh))

    def __call__(self, x, use_pallas=True):
        # x: (B, T, n_mel)  (PyTorch transposes to NCL internally; we stay channels-last)
        for (w, scale, shift, apply_tanh) in self.layers:
            T = x.shape[1]
            xp = jnp.pad(x, ((0, 0), (self.pad, self.pad), (0, 0)))
            if use_pallas:
                x = conv_bn_act_pallas(xp, w, scale, shift, T, apply_tanh)
            else:
                x = conv_bn_act_ref(xp, w, scale, shift, T, apply_tanh)
            # F.dropout(..., 0.5, self.training): inference mode -> identity
        return x  # (B, T, n_mel)


# ----------------------------- main -----------------------------

if __name__ == "__main__":
    key = jax.random.PRNGKey(0)
    k_x, k_p = jax.random.split(key)

    B, T, n_mel = 2, 32, 80
    postnet = PostNetPallas(k_p, n_mel_channels=n_mel, postnet_embedding_dim=512,
                            postnet_kernel_size=5, postnet_n_convolutions=5)

    x = jax.random.normal(k_x, (B, T, n_mel), dtype=jnp.float32)

    out = jax.block_until_ready(postnet(x, use_pallas=True))
    assert out.shape == (B, T, n_mel), out.shape
    assert out.dtype == jnp.float32

    out_ref = jax.block_until_ready(postnet(x, use_pallas=False))
    np.testing.assert_allclose(np.asarray(out), np.asarray(out_ref),
                               rtol=5e-3, atol=5e-3)

    print("KERNEL_OK")
</pallas_src>

<mosaic_0001>
module attributes {stable_mosaic.version = 11 : i64} {
  func.func @kernel(%arg0: i32, %arg1: i32, %arg2: memref<1x36x80xf32, #tpu.memory_space<vmem>>, %arg3: memref<5x80x256xf32, #tpu.memory_space<vmem>>, %arg4: memref<1x256xf32, #tpu.memory_space<vmem>>, %arg5: memref<1x256xf32, #tpu.memory_space<vmem>>, %arg6: memref<1x32x256xf32, #tpu.memory_space<vmem>>) attributes {dimension_semantics = [#tpu.dimension_semantics<parallel>, #tpu.dimension_semantics<parallel>], iteration_bounds = array<i64: 2, 2>, scalar_prefetch = 0 : i64, scratch_operands = 0 : i64, tpu.core_type = #tpu.core_type<tc>, window_params = [{transform_indices = @transform_0, window_bounds = array<i64: 1, 36, 80>}, {transform_indices = @transform_1, window_bounds = array<i64: 5, 80, 256>}, {transform_indices = @transform_2, window_bounds = array<i64: 1, 256>}, {transform_indices = @transform_3, window_bounds = array<i64: 1, 256>}, {transform_indices = @transform_4, window_bounds = array<i64: 1, 32, 256>}]} {
    %c0 = arith.constant 0 : index
    %c0_0 = arith.constant 0 : index
    %c0_1 = arith.constant 0 : index
    %0 = vector.load %arg2[%c0, %c0_0, %c0_1] : memref<1x36x80xf32, #tpu.memory_space<vmem>>, vector<1x36x80xf32>
    %1 = vector.shape_cast %0 : vector<1x36x80xf32> to vector<36x80xf32>
    %cst = arith.constant 0.000000e+00 : f32
    %2 = vector.broadcast %cst : f32 to vector<32x256xf32>
    %3 = vector.extract_strided_slice %1 {offsets = [0, 0], sizes = [32, 80], strides = [1, 1]} : vector<36x80xf32> to vector<32x80xf32>
    %c0_2 = arith.constant 0 : index
    %c0_3 = arith.constant 0 : index
    %c0_4 = arith.constant 0 : index
    %4 = vector.load %arg3[%c0_2, %c0_3, %c0_4] : memref<5x80x256xf32, #tpu.memory_space<vmem>>, vector<1x80x256xf32>
    %5 = vector.shape_cast %4 : vector<1x80x256xf32> to vector<80x256xf32>
    %cst_5 = arith.constant dense<0.000000e+00> : vector<32x256xf32>
    %6 = tpu.matmul %3, %5, %cst_5 {dimension_numbers = #tpu.dot_dimension_numbers<[1], [0], [0], [1], [0, 0, 1, 1], [], []>} : vector<32x80xf32>, vector<80x256xf32>, vector<32x256xf32> -> vector<32x256xf32>
    %7 = arith.addf %2, %6 : vector<32x256xf32>
    %8 = vector.extract_strided_slice %1 {offsets = [1, 0], sizes = [32, 80], strides = [1, 1]} : vector<36x80xf32> to vector<32x80xf32>
    %c1 = arith.constant 1 : index
    %c0_6 = arith.constant 0 : index
    %c0_7 = arith.constant 0 : index
    %9 = vector.load %arg3[%c1, %c0_6, %c0_7] : memref<5x80x256xf32, #tpu.memory_space<vmem>>, vector<1x80x256xf32>
    %10 = vector.shape_cast %9 : vector<1x80x256xf32> to vector<80x256xf32>
    %cst_8 = arith.constant dense<0.000000e+00> : vector<32x256xf32>
    %11 = tpu.matmul %8, %10, %cst_8 {dimension_numbers = #tpu.dot_dimension_numbers<[1], [0], [0], [1], [0, 0, 1, 1], [], []>} : vector<32x80xf32>, vector<80x256xf32>, vector<32x256xf32> -> vector<32x256xf32>
    %12 = arith.addf %7, %11 : vector<32x256xf32>
    %13 = vector.extract_strided_slice %1 {offsets = [2, 0], sizes = [32, 80], strides = [1, 1]} : vector<36x80xf32> to vector<32x80xf32>
    %c2 = arith.constant 2 : index
    %c0_9 = arith.constant 0 : index
    %c0_10 = arith.constant 0 : index
    %14 = vector.load %arg3[%c2, %c0_9, %c0_10] : memref<5x80x256xf32, #tpu.memory_space<vmem>>, vector<1x80x256xf32>
    %15 = vector.shape_cast %14 : vector<1x80x256xf32> to vector<80x256xf32>
    %cst_11 = arith.constant dense<0.000000e+00> : vector<32x256xf32>
    %16 = tpu.matmul %13, %15, %cst_11 {dimension_numbers = #tpu.dot_dimension_numbers<[1], [0], [0], [1], [0, 0, 1, 1], [], []>} : vector<32x80xf32>, vector<80x256xf32>, vector<32x256xf32> -> vector<32x256xf32>
    %17 = arith.addf %12, %16 : vector<32x256xf32>
    %18 = vector.extract_strided_slice %1 {offsets = [3, 0], sizes = [32, 80], strides = [1, 1]} : vector<36x80xf32> to vector<32x80xf32>
    %c3 = arith.constant 3 : index
    %c0_12 = arith.constant 0 : index
    %c0_13 = arith.constant 0 : index
    %19 = vector.load %arg3[%c3, %c0_12, %c0_13] : memref<5x80x256xf32, #tpu.memory_space<vmem>>, vector<1x80x256xf32>
    %20 = vector.shape_cast %19 : vector<1x80x256xf32> to vector<80x256xf32>
    %cst_14 = arith.constant dense<0.000000e+00> : vector<32x256xf32>
    %21 = tpu.matmul %18, %20, %cst_14 {dimension_numbers = #tpu.dot_dimension_numbers<[1], [0], [0], [1], [0, 0, 1, 1], [], []>} : vector<32x80xf32>, vector<80x256xf32>, vector<32x256xf32> -> vector<32x256xf32>
    %22 = arith.addf %17, %21 : vector<32x256xf32>
    %23 = vector.extract_strided_slice %1 {offsets = [4, 0], sizes = [32, 80], strides = [1, 1]} : vector<36x80xf32> to vector<32x80xf32>
    %c4 = arith.constant 4 : index
    %c0_15 = arith.constant 0 : index
    %c0_16 = arith.constant 0 : index
    %24 = vector.load %arg3[%c4, %c0_15, %c0_16] : memref<5x80x256xf32, #tpu.memory_space<vmem>>, vector<1x80x256xf32>
    %25 = vector.shape_cast %24 : vector<1x80x256xf32> to vector<80x256xf32>
    %cst_17 = arith.constant dense<0.000000e+00> : vector<32x256xf32>
    %26 = tpu.matmul %23, %25, %cst_17 {dimension_numbers = #tpu.dot_dimension_numbers<[1], [0], [0], [1], [0, 0, 1, 1], [], []>} : vector<32x80xf32>, vector<80x256xf32>, vector<32x256xf32> -> vector<32x256xf32>
    %27 = arith.addf %22, %26 : vector<32x256xf32>
    %c0_18 = arith.constant 0 : index
    %c0_19 = arith.constant 0 : index
    %28 = vector.load %arg4[%c0_18, %c0_19] : memref<1x256xf32, #tpu.memory_space<vmem>>, vector<1x256xf32>
    %29 = vector.broadcast %28 : vector<1x256xf32> to vector<32x256xf32>
    %30 = arith.mulf %27, %29 : vector<32x256xf32>
    %c0_20 = arith.constant 0 : index
    %c0_21 = arith.constant 0 : index
    %31 = vector.load %arg5[%c0_20, %c0_21] : memref<1x256xf32, #tpu.memory_space<vmem>>, vector<1x256xf32>
    %32 = vector.broadcast %31 : vector<1x256xf32> to vector<32x256xf32>
    %33 = arith.addf %30, %32 : vector<32x256xf32>
    %34 = math.tanh %33 : vector<32x256xf32>
    %c0_22 = arith.constant 0 : index
    %c0_23 = arith.constant 0 : index
    %c0_24 = arith.constant 0 : index
    %35 = vector.load %arg6[%c0_22, %c0_23, %c0_24] : memref<1x32x256xf32, #tpu.memory_space<vmem>>, vector<1x32x256xf32>
    %36 = vector.shape_cast %35 : vector<1x32x256xf32> to vector<32x256xf32>
    %37 = vector.shape_cast %34 : vector<32x256xf32> to vector<1x32x256xf32>
    tpu.vector_store %arg6[%c0_22, %c0_23, %c0_24], %37 {strides = array<i32>} : memref<1x32x256xf32, #tpu.memory_space<vmem>>, vector<1x32x256xf32>,
    return
  }
  func.func @transform_0(%arg0: i32, %arg1: i32) -> (i32, i32, i32) {
    %c0_i32 = arith.constant 0 : i32
    %c0_i32_0 = arith.constant 0 : i32
    %c0_i32_1 = arith.constant 0 : i32
    return %arg0, %c0_i32, %c0_i32_0 : i32, i32, i32
  }
  func.func @transform_1(%arg0: i32, %arg1: i32) -> (i32, i32, i32) {
    %c0_i32 = arith.constant 0 : i32
    %c0_i32_0 = arith.constant 0 : i32
    %c0_i32_1 = arith.constant 0 : i32
    return %c0_i32, %c0_i32_0, %arg1 : i32, i32, i32
  }
  func.func @transform_2(%arg0: i32, %arg1: i32) -> (i32, i32) {
    %c0_i32 = arith.constant 0 : i32
    %c0_i32_0 = arith.constant 0 : i32
    return %c0_i32, %arg1 : i32, i32
  }
  func.func @transform_3(%arg0: i32, %arg1: i32) -> (i32, i32) {
    %c0_i32 = arith.constant 0 : i32
    %c0_i32_0 = arith.constant 0 : i32
    return %c0_i32, %arg1 : i32, i32
  }
  func.func @transform_4(%arg0: i32, %arg1: i32) -> (i32, i32, i32) {
    %c0_i32 = arith.constant 0 : i32
    %c0_i32_0 = arith.constant 0 : i32
    return %arg0, %c0_i32, %arg1 : i32, i32, i32
  }
}

</mosaic_0001>

<llo_original>
// kernel: tpu_custom_call.1
$region0: #{tpu_custom_call.1}
  #allocation0 [shape = 'u32[]', space=smem, size = 0x4, offset = 0x4, fixed_abs, tag = 'smem constant byte address 0x4 - core index']
  #allocation1 [shape = 'u32[144,128]{1,0:T(1,128)}', space=vmem, size = 0x12000, scoped, tag = 'internal scratch']
  %s0 = inlined_call_operand.vmem [shape: f32[2,36,80], index: 0, kind: input, shape index: {}]
  %s1 = inlined_call_operand.hbm [shape: f32[5,80,512], index: 1, kind: input, shape index: {}]
  %s2 = inlined_call_operand.vmem [shape: f32[1,512], index: 2, kind: input, shape index: {}]
  %s3 = inlined_call_operand.vmem [shape: f32[1,512], index: 3, kind: input, shape index: {}]
  %s4 = inlined_call_operand.hbm [shape: f32[2,32,512], index: 4, kind: output, shape index: {}]
  %s5 = sld [smem:[#allocation0]]
  $region53: #{tpu_custom_call.1} parent=0
    _
  %s7 = ssub.s32 1, %s5
  %s8 = scalar_select 0, %s7, %s5
  $region1: #{tpu_custom_call.1} parent=0
    #allocation2 [shape = 'u8[819200]{0}', space=vmem, size = 0xc8000, scoped, tag = 'input window, operand 1']
    #allocation3 [shape = 's32[2]{0}', space=sflag, size = 0x8, scoped, tag = 'scoped memory for tpu_custom_call.1']
    #allocation4 [shape = 's32[2]{0}', space=sflag, size = 0x8, scoped, tag = 'scoped memory for tpu_custom_call.1']
    #allocation5 [shape = 'u8[65536]{0}', space=vmem, size = 0x10000, scoped, tag = 'output window, operand 0']
    %9 = vsyncpa [#allocation3], 0
    %s10 = scalar_lea.sflag [#allocation3], 1
    %11 = vsyncpa %s10, 0
    %12 = vsyncpa [#allocation4], 0
    %s13 = scalar_lea.sflag [#allocation4], 1
    %14 = vsyncpa %s13, 0
    loop: start=0, step=1, limit=6
    $region2: #{tpu_custom_call.1} parent=1 // loop_pre_header
      _
    $region3: #{tpu_custom_call.1} parent=1 // loop_header
      %s16 = sphi 0, %s20
      %p17 = scmp.ge.s32.totalorder %s16, 6
      %s23 = sphi 0, %s35
      %s24 = sphi 0, %s31
      %s25 = sphi 0, %s23
      %s26 = sphi 0, %s24
      %s27 = sphi 0, %s25
      %s28 = sphi 0, %s26
      %s38 = sphi 0, %s40
      %s41 = sphi 0, %s38
      %s42 = sphi 0, %s41
      %s58 = sphi 0, %s42
      %s64 = sphi 0, %s66
      %s67 = sphi 0, %s64
      %s68 = sphi 0, %s67
      %s84 = sphi 0, %s68
      %s90 = sphi 0, %s92
      %s93 = sphi 0, %s90
      %s94 = sphi 0, %s93
      %s110 = sphi 0, %s94
      %s116 = sphi 0, %s118
      %s119 = sphi 0, %s116
      %s120 = sphi 0, %s119
      %s136 = sphi 0, %s120
      %s144 = sphi 0, %s146
      %s147 = sphi 0, %s144
      %s148 = sphi 0, %s147
      %s164 = sphi 0, %s148
    $region4: #{tpu_custom_call.1} parent=1 // loop_header_branch
      %19 = sbr.rel (%p17) target = $region8
    $region5: #{tpu_custom_call.1} parent=1 // loop_body
      %s21 = ssub.s32 %s16, 1
      %s22 = ssub.s32 %s16, 2
      %s29 = sadd.s32 1, %s24
      %p30 = scmp.ge.s32.totalorder %s29, 2
      %s31 = scalar_select %p30, 0, %s29
      %s32 = sadd.s32 1, %s23
      %s33 = scalar_select %p30, %s32, %s23
      %p34 = scmp.ge.s32.totalorder %s33, 2
      %s35 = scalar_select %p34, 0, %s33
      %s36 = ssub.s32 %s23, %s35
      %p37 = scmp.eq.s32.totalorder %s36, 0
      %s39 = sadd.s32 %s38, 1
      %s40 = scalar_select %p37, %s38, %s39
      %p43 = pneg %p37
      %p44 = scmp.eq.s32.totalorder %s16, 3
      %p45 = por %p43, %p44
      %p46 = scmp.ne.s32.totalorder %s38, %s41
      %p47 = scmp.eq.s32.totalorder %s16, 0
      %p48 = por %p46, %p47
      %p49 = scmp.ne.s32.totalorder %s38, %s41
      %p50 = scmp.eq.s32.totalorder %s21, 3
      %p51 = por %p49, %p50
      %p52 = scmp.ne.s32.totalorder %s41, %s42
      %p53 = scmp.eq.s32.totalorder %s21, 0
      %p54 = por %p52, %p53
      %p55 = scmp.ne.s32.totalorder %s41, %s42
      %p56 = scmp.eq.s32.totalorder %s22, 3
      %p57 = por %p55, %p56
      %p59 = scmp.ne.s32.totalorder %s42, %s58
      %p60 = scmp.eq.s32.totalorder %s22, 0
      %p61 = por %p59, %p60
      %s62 = ssub.s32 %s24, %s31
      %p63 = scmp.eq.s32.totalorder %s62, 0
      %s65 = sadd.s32 %s64, 1
      %s66 = scalar_select %p63, %s64, %s65
      %p69 = pneg %p63
      %p70 = scmp.eq.s32.totalorder %s16, 3
      %p71 = por %p69, %p70
      %p72 = scmp.ne.s32.totalorder %s64, %s67
      %p73 = scmp.eq.s32.totalorder %s16, 0
      %p74 = por %p72, %p73
      %p75 = scmp.ne.s32.totalorder %s64, %s67
      %p76 = scmp.eq.s32.totalorder %s21, 3
      %p77 = por %p75, %p76
      %p78 = scmp.ne.s32.totalorder %s67, %s68
      %p79 = scmp.eq.s32.totalorder %s21, 0
      %p80 = por %p78, %p79
      %p81 = scmp.ne.s32.totalorder %s67, %s68
      %p82 = scmp.eq.s32.totalorder %s22, 3
      %p83 = por %p81, %p82
      %p85 = scmp.ne.s32.totalorder %s68, %s84
      %p86 = scmp.eq.s32.totalorder %s22, 0
      %p87 = por %p85, %p86
      %s88 = ssub.s32 %s24, %s31
      %p89 = scmp.eq.s32.totalorder %s88, 0
      %s91 = sadd.s32 %s90, 1
      %s92 = scalar_select %p89, %s90, %s91
      %p95 = pneg %p89
      %p96 = scmp.eq.s32.totalorder %s16, 3
      %p97 = por %p95, %p96
      %p98 = scmp.ne.s32.totalorder %s90, %s93
      %p99 = scmp.eq.s32.totalorder %s16, 0
      %p100 = por %p98, %p99
      %p101 = scmp.ne.s32.totalorder %s90, %s93
      %p102 = scmp.eq.s32.totalorder %s21, 3
      %p103 = por %p101, %p102
      %p104 = scmp.ne.s32.totalorder %s93, %s94
      %p105 = scmp.eq.s32.totalorder %s21, 0
      %p106 = por %p104, %p105
      %p107 = scmp.ne.s32.totalorder %s93, %s94
      %p108 = scmp.eq.s32.totalorder %s22, 3
      %p109 = por %p107, %p108
      %p111 = scmp.ne.s32.totalorder %s94, %s110
      %p112 = scmp.eq.s32.totalorder %s22, 0
      %p113 = por %p111, %p112
      %s114 = ssub.s32 %s24, %s31
      %p115 = scmp.eq.s32.totalorder %s114, 0
      %s117 = sadd.s32 %s116, 1
      %s118 = scalar_select %p115, %s116, %s117
      %p121 = pneg %p115
      %p122 = scmp.eq.s32.totalorder %s16, 3
      %p123 = por %p121, %p122
      %p124 = scmp.ne.s32.totalorder %s116, %s119
      %p125 = scmp.eq.s32.totalorder %s16, 0
      %p126 = por %p124, %p125
      %p127 = scmp.ne.s32.totalorder %s116, %s119
      %p128 = scmp.eq.s32.totalorder %s21, 3
      %p129 = por %p127, %p128
      %p130 = scmp.ne.s32.totalorder %s119, %s120
      %p131 = scmp.eq.s32.totalorder %s21, 0
      %p132 = por %p130, %p131
      %p133 = scmp.ne.s32.totalorder %s119, %s120
      %p134 = scmp.eq.s32.totalorder %s22, 3
      %p135 = por %p133, %p134
      %p137 = scmp.ne.s32.totalorder %s120, %s136
      %p138 = scmp.eq.s32.totalorder %s22, 0
      %p139 = por %p137, %p138
      %s140 = ssub.s32 %s23, %s35
      %s141 = ssub.s32 %s24, %s31
      %s142 = sor.u32 %s140, %s141
      %p143 = scmp.eq.s32.totalorder %s142, 0
      %s145 = sadd.s32 %s144, 1
      %s146 = scalar_select %p143, %s144, %s145
      %p149 = pneg %p143
      %p150 = scmp.eq.s32.totalorder %s16, 3
      %p151 = por %p149, %p150
      %p152 = scmp.ne.s32.totalorder %s144, %s147
      %p153 = scmp.eq.s32.totalorder %s16, 0
      %p154 = por %p152, %p153
      %p155 = scmp.ne.s32.totalorder %s144, %s147
      %p156 = scmp.eq.s32.totalorder %s21, 3
      %p157 = por %p155, %p156
      %p158 = scmp.ne.s32.totalorder %s147, %s148
      %p159 = scmp.eq.s32.totalorder %s21, 0
      %p160 = por %p158, %p159
      %p161 = scmp.ne.s32.totalorder %s147, %s148
      %p162 = scmp.eq.s32.totalorder %s22, 3
      %p163 = por %p161, %p162
      %p165 = scmp.ne.s32.totalorder %s148, %s164
      %p166 = scmp.eq.s32.totalorder %s22, 0
      %p167 = por %p165, %p166
      %p168 = scmp.le.s32.totalorder 1, %s16
      %p169 = scmp.lt.s32.totalorder %s16, 5
      %p170 = pnand %p168, %p169
      %p171 = pneg %p170
      // Predicated region
      $region9: #{tpu_custom_call.1} parent=5 // pred_check
        _
      $region10: #{tpu_custom_call.1} parent=5 // pred_check_branch
        %173 = sbr.rel (%p170) target = $region12
      $region11: #{tpu_custom_call.1} parent=5 // pred_region
        %s174 = ssub.s32 %s16, 1
      $region12: #{tpu_custom_call.1} parent=5 // pred_fallthru
        _
      %p175 = scmp.lt.s32.totalorder %s16, 4
      // Predicated region
      $region13: #{tpu_custom_call.1} parent=5 // pred_check
        %p176 = pneg %p175
      $region14: #{tpu_custom_call.1} parent=5 // pred_check_branch
        %178 = sbr.rel (%p176) target = $region16
      $region15: #{tpu_custom_call.1} parent=5 // pred_region
        // Predicated region
        $region17: #{tpu_custom_call.1} parent=15 // pred_check
          %p179 = pneg %p48
        $region18: #{tpu_custom_call.1} parent=15 // pred_check_branch
          %181 = sbr.rel (%p179) target = $region20
        $region19: #{tpu_custom_call.1} parent=15 // pred_region
          %p182 = scmp.lt.s32.totalorder %s23, 1
          %s183 = scalar_select %p182, %s23, 1
          %s184 = smul.addr %s183, 5
          %s185 = smul.addr %s184, 8
          %s186 = scalar_lea.vmem %s0, %s185
        $region20: #{tpu_custom_call.1} parent=15 // pred_fallthru
          _
        // Predicated region
        $region21: #{tpu_custom_call.1} parent=15 // pred_check
          %p187 = pneg %p74
        $region22: #{tpu_custom_call.1} parent=15 // pred_check_branch
          %189 = sbr.rel (%p187) target = $region24
        $region23: #{tpu_custom_call.1} parent=15 // pred_region
          %s190 = sand.u32 %s64, 1
          %s191 = scalar_lea.sflag [#allocation3], %s190
          %s192 = sand.u32 %s64, 1
          %s193 = smul.addr %s192, 800
          %s194 = scalar_lea.vmem [#allocation2], %s193
          %s195 = smul.u32 2, %s24
          %s197 = ssub.s32 12800, 12800
          %198 = vsyncadd %s191, %s197
          %s199 = smul.addr %s195, 128
          %s200 = scalar_lea.hbm %s1, %s199
          %s201 = sshll.u32 %s194, 4
          %s202 = int_to_ptr.vmem [resolvable:$true] %s201
          %207 = dma.hbm_to_vmem [thread:$0]  %s200, 12800, %s202, %s191, 512, 256, 16
        $region24: #{tpu_custom_call.1} parent=15 // pred_fallthru
          _
        // Predicated region
        $region25: #{tpu_custom_call.1} parent=15 // pred_check
          %p208 = pneg %p100
        $region26: #{tpu_custom_call.1} parent=15 // pred_check_branch
          %210 = sbr.rel (%p208) target = $region28
        $region27: #{tpu_custom_call.1} parent=15 // pred_region
          %s211 = smul.u32 2, %s24
          %p212 = scmp.lt.s32.totalorder %s211, 3
          %s213 = scalar_select %p212, %s211, 3
          %s214 = scalar_lea.vmem %s2, %s213
          %s215 = smul.u32 2, %s24
        $region28: #{tpu_custom_call.1} parent=15 // pred_fallthru
          _
        // Predicated region
        $region29: #{tpu_custom_call.1} parent=15 // pred_check
          %p216 = pneg %p126
        $region30: #{tpu_custom_call.1} parent=15 // pred_check_branch
          %218 = sbr.rel (%p216) target = $region32
        $region31: #{tpu_custom_call.1} parent=15 // pred_region
          %s219 = smul.u32 2, %s24
          %p220 = scmp.lt.s32.totalorder %s219, 3
          %s221 = scalar_select %p220, %s219, 3
          %s222 = scalar_lea.vmem %s3, %s221
          %s223 = smul.u32 2, %s24
        $region32: #{tpu_custom_call.1} parent=15 // pred_fallthru
          _
      $region16: #{tpu_custom_call.1} parent=5 // pred_fallthru
        _
      %p224 = scmp.le.s32.totalorder 1, %s16
      %p225 = scmp.lt.s32.totalorder %s16, 5
      %p226 = pnand %p224, %p225
      %p227 = pneg %p226
      // Predicated region
      $region33: #{tpu_custom_call.1} parent=5 // pred_check
        _
      $region34: #{tpu_custom_call.1} parent=5 // pred_check_branch
        %229 = sbr.rel (%p226) target = $region36
      $region35: #{tpu_custom_call.1} parent=5 // pred_region
        %s230 = ssub.s32 %s16, 1
        %s231 = sand.u32 %s67, 1
        %s232 = scalar_lea.sflag [#allocation3], %s231
        %s233 = sand.u32 %s67, 1
        %s234 = smul.addr %s233, 800
        %s235 = scalar_lea.vmem [#allocation2], %s234
        // Predicated region
        $region37: #{tpu_custom_call.1} parent=35 // pred_check
          %p236 = pneg %p80
        $region38: #{tpu_custom_call.1} parent=35 // pred_check_branch
          %238 = sbr.rel (%p236) target = $region40
        $region39: #{tpu_custom_call.1} parent=35 // pred_region
          %239 = dma.done %s232, 12800
        $region40: #{tpu_custom_call.1} parent=35 // pred_fallthru
          _
        %p240 = scmp.lt.s32.totalorder %s25, 1
        %s241 = scalar_select %p240, %s25, 1
        %s242 = smul.addr %s241, 5
        %s243 = smul.addr %s242, 8
        %s244 = scalar_lea.vmem %s0, %s243
        %p245 = pneg %p54
        %p246 = pneg %p51
        %s247 = sand.u32 %s67, 1
        %s248 = scalar_lea.sflag [#allocation3], %s247
        %s249 = sand.u32 %s67, 1
        %s250 = smul.addr %s249, 800
        %s251 = scalar_lea.vmem [#allocation2], %s250
        %p252 = pneg %p80
        %p253 = pneg %p77
        %s254 = smul.u32 2, %s26
        %p255 = scmp.lt.s32.totalorder %s254, 3
        %s256 = scalar_select %p255, %s254, 3
        %s257 = scalar_lea.vmem %s2, %s256
        %p258 = pneg %p106
        %p259 = pneg %p103
        %s260 = smul.u32 2, %s26
        %p261 = scmp.lt.s32.totalorder %s260, 3
        %s262 = scalar_select %p261, %s260, 3
        %s263 = scalar_lea.vmem %s3, %s262
        %p264 = pneg %p132
        %p265 = pneg %p129
        %p266 = pneg %p160
        %p267 = pneg %p157
        %s268 = sand.u32 %s147, 1
        %s269 = scalar_lea.sflag [#allocation4], %s268
        %s270 = sand.u32 %s147, 1
        %s271 = smul.addr %s270, 64
        %s272 = scalar_lea.vmem [#allocation5], %s271
        %p273 = scmp.lt.s32.totalorder %s25, 1
        %s274 = scalar_select %p273, %s25, 1
        %s275 = smul.addr %s274, 5
        %s276 = smul.addr %s275, 8
        %s277 = scalar_lea.vmem %s0, %s276
        %s278 = smul.u32 2, %s26
        %s279 = smul.u32 2, %s26
        %p280 = scmp.lt.s32.totalorder %s279, 3
        %s281 = scalar_select %p280, %s279, 3
        %s282 = scalar_lea.vmem %s2, %s281
        %s283 = smul.u32 2, %s26
        %s284 = smul.u32 2, %s26
        %p285 = scmp.lt.s32.totalorder %s284, 3
        %s286 = scalar_select %p285, %s284, 3
        %s287 = scalar_lea.vmem %s3, %s286
        %s288 = smul.u32 2, %s26
        %s289 = smul.u32 2, %s26
        %v290 = vld [vmem:[%s277] sm:$0xff]
        %v291 = vld [vmem:[%s277 + $0x8] sm:$0xff]
        %v292 = vld [vmem:[%s277 + $0x10] sm:$0xff]
        %v293 = vld [vmem:[%s277 + $0x18] sm:$0xff]
        %v294 = vld [vmem:[%s277 + $0x20] sm:$0xf]
        %v295 = vld [vmem:[%s235] sm:$0xff]
        %v296 = vld [vmem:[%s235 + $0x8] sm:$0xff]
        %v297 = vld [vmem:[%s235 + $0x10] sm:$0xff]
        %v298 = vld [vmem:[%s235 + $0x18] sm:$0xff]
        %v299 = vld [vmem:[%s235 + $0x20] sm:$0xff]
        %v300 = vld [vmem:[%s235 + $0x28] sm:$0xff]
        %v301 = vld [vmem:[%s235 + $0x30] sm:$0xff]
        %v302 = vld [vmem:[%s235 + $0x38] sm:$0xff]
        %v303 = vld [vmem:[%s235 + $0x40] sm:$0xff]
        %v304 = vld [vmem:[%s235 + $0x48] sm:$0xff]
        %v305 = vld [vmem:[%s235 + $0x50] sm:$0xff]
        %v306 = vld [vmem:[%s235 + $0x58] sm:$0xff]
        %v307 = vld [vmem:[%s235 + $0x60] sm:$0xff]
        %v308 = vld [vmem:[%s235 + $0x68] sm:$0xff]
        %v309 = vld [vmem:[%s235 + $0x70] sm:$0xff]
        %v310 = vld [vmem:[%s235 + $0x78] sm:$0xff]
        %v311 = vld [vmem:[%s235 + $0x80] sm:$0xff]
        %v312 = vld [vmem:[%s235 + $0x88] sm:$0xff]
        %v313 = vld [vmem:[%s235 + $0x90] sm:$0xff]
        %v314 = vld [vmem:[%s235 + $0x98] sm:$0xff]
        %s315 = scalar_lea.vmem %s235, 160 [#allocation2]
        %v316 = vld [vmem:[%s315] sm:$0xff]
        %v317 = vld [vmem:[%s315 + $0x8] sm:$0xff]
        %v318 = vld [vmem:[%s315 + $0x10] sm:$0xff]
        %v319 = vld [vmem:[%s315 + $0x18] sm:$0xff]
        %v320 = vld [vmem:[%s315 + $0x20] sm:$0xff]
        %v321 = vld [vmem:[%s315 + $0x28] sm:$0xff]
        %v322 = vld [vmem:[%s315 + $0x30] sm:$0xff]
        %v323 = vld [vmem:[%s315 + $0x38] sm:$0xff]
        %v324 = vld [vmem:[%s315 + $0x40] sm:$0xff]
        %v325 = vld [vmem:[%s315 + $0x48] sm:$0xff]
        %v326 = vld [vmem:[%s315 + $0x50] sm:$0xff]
        %v327 = vld [vmem:[%s315 + $0x58] sm:$0xff]
        %v328 = vld [vmem:[%s315 + $0x60] sm:$0xff]
        %v329 = vld [vmem:[%s315 + $0x68] sm:$0xff]
        %v330 = vld [vmem:[%s315 + $0x70] sm:$0xff]
        %v331 = vld [vmem:[%s315 + $0x78] sm:$0xff]
        %v332 = vld [vmem:[%s315 + $0x80] sm:$0xff]
        %v333 = vld [vmem:[%s315 + $0x88] sm:$0xff]
        %v334 = vld [vmem:[%s315 + $0x90] sm:$0xff]
        %v335 = vld [vmem:[%s315 + $0x98] sm:$0xff]
        %vm341 = vcmask 1046528
        %v342 = vrot.slane %v290, 1
        %v343 = vrot.slane %v291, 1
        %v344 = vsel %vm341, %v342, %v343
        %v345 = vrot.slane %v292, 1
        %v346 = vsel %vm341, %v343, %v345
        %v347 = vrot.slane %v293, 1
        %v348 = vsel %vm341, %v345, %v347
        %v349 = vrot.slane %v294, 1
        %v350 = vsel %vm341, %v347, %v349
        %vm351 = vcmask 654336
        %v352 = vsel %vm351, %v344, 0
        %v354 = vsel %vm351, %v346, 0
        %v356 = vsel %vm351, %v348, 0
        %v358 = vsel %vm351, %v350, 0
        %360 = vmatprep.subr.mxu0 %v317
        %361 = vmatpush1.msra.mxu0 %v316
        %362 = vmatprep.subr.mxu0 %v319
        %363 = vmatpush1.msra.mxu0 %v318
        %364 = vmatprep.subr.mxu0 %v321
        %365 = vmatpush1.msra.mxu0 %v320
        %366 = vmatprep.subr.mxu0 %v323
        %367 = vmatpush1.msra.mxu0 %v322
        %368 = vmatprep.subr.mxu0 %v325
        %369 = vmatpush1.msra.mxu0 %v324
        %370 = vmatprep.subr.mxu0 %v327
        %371 = vmatpush1.msra.mxu0 %v326
        %372 = vmatprep.subr.mxu0 %v329
        %373 = vmatpush1.msra.mxu0 %v328
        %374 = vmatprep.subr.mxu0 %v331
        %375 = vmatpush1.msra.mxu0 %v330
        %376 = vmatprep.subr.mxu0 %v333
        %377 = vmatpush1.msra.mxu0 %v332
        %378 = vmatprep.subr.mxu0 %v335
        %379 = vmatpush1.msra.mxu0 %v334
        %380 = vmatprep.subr.mxu0 0.0
        %381 = vmatpush1.msra.mxu0 0.0
        %382 = vmatprep.subr.mxu0 0.0
        %383 = vmatpush1.msra.mxu0 0.0
        %384 = vmatprep.subr.mxu0 0.0
        %385 = vmatpush1.msra.mxu0 0.0
        %386 = vmatprep.subr.mxu0 0.0
        %387 = vmatpush1.msra.mxu0 0.0
        %388 = vmatprep.subr.mxu0 0.0
        %389 = vmatpush1.msra.mxu0 0.0
        %390 = vmatprep.subr.mxu0 0.0
        %391 = vmatpush1.msra.mxu0 0.0
        %392 = vmatprep.subr.mxu0 0.0
        %393 = vmatpush1.msra.mxu0 0.0
        %394 = vmatprep.subr.mxu0 0.0
        %395 = vmatpush1.msra.mxu0 0.0
        %396 = vmatprep.subr.mxu0 0.0
        %397 = vmatpush1.msra.mxu0 0.0
        %398 = vmatprep.subr.mxu0 0.0
        %399 = vmatpush1.msra.mxu0 0.0
        %400 = vmatprep.subr.mxu0 0.0
        %401 = vmatpush1.msra.mxu0 0.0
        %402 = vmatprep.subr.mxu0 0.0
        %403 = vmatpush1.msra.mxu0 0.0
        %404 = vmatprep.subr.mxu0 0.0
        %405 = vmatpush1.msra.mxu0 0.0
        %406 = vmatprep.subr.mxu0 0.0
        %407 = vmatpush1.msra.mxu0 0.0
        %408 = vmatprep.subr.mxu0 0.0
        %409 = vmatpush1.msra.mxu0 0.0
        %410 = vmatprep.subr.mxu0 0.0
        %411 = vmatpush1.msra.mxu0 0.0
        %412 = vmatprep.subr.mxu0 0.0
        %413 = vmatpush1.msra.mxu0 0.0
        %414 = vmatprep.subr.mxu0 0.0
        %415 = vmatpush1.msra.mxu0 0.0
        %416 = vmatprep.subr.mxu0 0.0
        %417 = vmatpush1.msra.mxu0 0.0
        %418 = vmatprep.subr.mxu0 0.0
        %419 = vmatpush1.msra.mxu0 0.0
        %420 = vmatprep.subr.mxu0 0.0
        %421 = vmatpush1.msra.mxu0 0.0
        %422 = vmatprep.subr.mxu0 0.0
        %423 = vmatpush1.msra.mxu0 0.0
        %424 = vmatprep.mubr.f32.mxu0 0.0
        %425 = vmatmul.mubr.f32.gmra.mrb[0].mxu0 %v352
        %v426 = vpop.f32.mrb[0].mxu0
        %v427 = vadd.f32 0.0, %v426
        %v428 = vpop.f32.mrb[0].mxu0
        %v429 = vadd.f32 0.0, %v428
        %430 = vmatprep.mubr.f32.mxu0 0.0
        %431 = vmatmul.mubr.f32.gmra.mrb[0].mxu0 %v354
        %v432 = vpop.f32.mrb[0].mxu0
        %v433 = vadd.f32 0.0, %v432
        %v434 = vpop.f32.mrb[0].mxu0
        %v435 = vadd.f32 0.0, %v434
        %436 = vmatprep.mubr.f32.mxu0 0.0
        %437 = vmatmul.mubr.f32.gmra.mrb[0].mxu0 %v356
        %v438 = vpop.f32.mrb[0].mxu0
        %v439 = vadd.f32 0.0, %v438
        %v440 = vpop.f32.mrb[0].mxu0
        %v441 = vadd.f32 0.0, %v440
        %442 = vmatprep.mubr.f32.mxu0 0.0
        %443 = vmatmul.mubr.f32.gmra.mrb[0].mxu0 %v358
        %v444 = vpop.f32.mrb[0].mxu0
        %v445 = vadd.f32 0.0, %v444
        %v446 = vpop.f32.mrb[0].mxu0
        %v447 = vadd.f32 0.0, %v446
        %448 = vdwg.mxu0
        %v449 = vsel %vm351, %v290, 0
        %v451 = vsel %vm351, %v291, 0
        %v453 = vsel %vm351, %v292, 0
        %v455 = vsel %vm351, %v293, 0
        %457 = vmatprep.subr.mxu0 %v296
        %458 = vmatpush1.msra.mxu0 %v295
        %459 = vmatprep.subr.mxu0 %v298
        %460 = vmatpush1.msra.mxu0 %v297
        %461 = vmatprep.subr.mxu0 %v300
        %462 = vmatpush1.msra.mxu0 %v299
        %463 = vmatprep.subr.mxu0 %v302
        %464 = vmatpush1.msra.mxu0 %v301
        %465 = vmatprep.subr.mxu0 %v304
        %466 = vmatpush1.msra.mxu0 %v303
        %467 = vmatprep.subr.mxu0 %v306
        %468 = vmatpush1.msra.mxu0 %v305
        %469 = vmatprep.subr.mxu0 %v308
        %470 = vmatpush1.msra.mxu0 %v307
        %471 = vmatprep.subr.mxu0 %v310
        %472 = vmatpush1.msra.mxu0 %v309
        %473 = vmatprep.subr.mxu0 %v312
        %474 = vmatpush1.msra.mxu0 %v311
        %475 = vmatprep.subr.mxu0 %v314
        %476 = vmatpush1.msra.mxu0 %v313
        %477 = vmatprep.subr.mxu0 0.0
        %478 = vmatpush1.msra.mxu0 0.0
        %479 = vmatprep.subr.mxu0 0.0
        %480 = vmatpush1.msra.mxu0 0.0
        %481 = vmatprep.subr.mxu0 0.0
        %482 = vmatpush1.msra.mxu0 0.0
        %483 = vmatprep.subr.mxu0 0.0
        %484 = vmatpush1.msra.mxu0 0.0
        %485 = vmatprep.subr.mxu0 0.0
        %486 = vmatpush1.msra.mxu0 0.0
        %487 = vmatprep.subr.mxu0 0.0
        %488 = vmatpush1.msra.mxu0 0.0
        %489 = vmatprep.subr.mxu0 0.0
        %490 = vmatpush1.msra.mxu0 0.0
        %491 = vmatprep.subr.mxu0 0.0
        %492 = vmatpush1.msra.mxu0 0.0
        %493 = vmatprep.subr.mxu0 0.0
        %494 = vmatpush1.msra.mxu0 0.0
        %495 = vmatprep.subr.mxu0 0.0
        %496 = vmatpush1.msra.mxu0 0.0
        %497 = vmatprep.subr.mxu0 0.0
        %498 = vmatpush1.msra.mxu0 0.0
        %499 = vmatprep.subr.mxu0 0.0
        %500 = vmatpush1.msra.mxu0 0.0
        %501 = vmatprep.subr.mxu0 0.0
        %502 = vmatpush1.msra.mxu0 0.0
        %503 = vmatprep.subr.mxu0 0.0
        %504 = vmatpush1.msra.mxu0 0.0
        %505 = vmatprep.subr.mxu0 0.0
        %506 = vmatpush1.msra.mxu0 0.0
        %507 = vmatprep.subr.mxu0 0.0
        %508 = vmatpush1.msra.mxu0 0.0
        %509 = vmatprep.subr.mxu0 0.0
        %510 = vmatpush1.msra.mxu0 0.0
        %511 = vmatprep.subr.mxu0 0.0
        %512 = vmatpush1.msra.mxu0 0.0
        %513 = vmatprep.subr.mxu0 0.0
        %514 = vmatpush1.msra.mxu0 0.0
        %515 = vmatprep.subr.mxu0 0.0
        %516 = vmatpush1.msra.mxu0 0.0
        %517 = vmatprep.subr.mxu0 0.0
        %518 = vmatpush1.msra.mxu0 0.0
        %519 = vmatprep.subr.mxu0 0.0
        %520 = vmatpush1.msra.mxu0 0.0
        %521 = vmatprep.mubr.f32.mxu0 0.0
        %522 = vmatmul.mubr.f32.gmra.mrb[0].mxu0 %v449
        %v523 = vpop.f32.mrb[0].mxu0
        %v524 = vadd.f32 %v427, %v523
        %v525 = vpop.f32.mrb[0].mxu0
        %v526 = vadd.f32 %v429, %v525
        %527 = vmatprep.mubr.f32.mxu0 0.0
        %528 = vmatmul.mubr.f32.gmra.mrb[0].mxu0 %v451
        %v529 = vpop.f32.mrb[0].mxu0
        %v530 = vadd.f32 %v433, %v529
        %v531 = vpop.f32.mrb[0].mxu0
        %v532 = vadd.f32 %v435, %v531
        %533 = vmatprep.mubr.f32.mxu0 0.0
        %534 = vmatmul.mubr.f32.gmra.mrb[0].mxu0 %v453
        %v535 = vpop.f32.mrb[0].mxu0
        %v536 = vadd.f32 %v439, %v535
        %v537 = vpop.f32.mrb[0].mxu0
        %v538 = vadd.f32 %v441, %v537
        %539 = vmatprep.mubr.f32.mxu0 0.0
        %540 = vmatmul.mubr.f32.gmra.mrb[0].mxu0 %v455
        %v541 = vpop.f32.mrb[0].mxu0
        %v542 = vadd.f32 %v445, %v541
        %v543 = vpop.f32.mrb[0].mxu0
        %v544 = vadd.f32 %v447, %v543
        %545 = vdwg.mxu0
        %s546 = scalar_lea.vmem %s235, 320 [#allocation2]
        %v547 = vld [vmem:[%s546] sm:$0xff]
        %v548 = vld [vmem:[%s546 + $0x8] sm:$0xff]
        %v549 = vld [vmem:[%s546 + $0x10] sm:$0xff]
        %v550 = vld [vmem:[%s546 + $0x18] sm:$0xff]
        %v551 = vld [vmem:[%s546 + $0x20] sm:$0xff]
        %v552 = vld [vmem:[%s546 + $0x28] sm:$0xff]
        %v553 = vld [vmem:[%s546 + $0x30] sm:$0xff]
        %v554 = vld [vmem:[%s546 + $0x38] sm:$0xff]
        %v555 = vld [vmem:[%s546 + $0x40] sm:$0xff]
        %v556 = vld [vmem:[%s546 + $0x48] sm:$0xff]
        %v557 = vld [vmem:[%s546 + $0x50] sm:$0xff]
        %v558 = vld [vmem:[%s546 + $0x58] sm:$0xff]
        %v559 = vld [vmem:[%s546 + $0x60] sm:$0xff]
        %v560 = vld [vmem:[%s546 + $0x68] sm:$0xff]
        %v561 = vld [vmem:[%s546 + $0x70] sm:$0xff]
        %v562 = vld [vmem:[%s546 + $0x78] sm:$0xff]
        %v563 = vld [vmem:[%s546 + $0x80] sm:$0xff]
        %v564 = vld [vmem:[%s546 + $0x88] sm:$0xff]
        %v565 = vld [vmem:[%s546 + $0x90] sm:$0xff]
        %v566 = vld [vmem:[%s546 + $0x98] sm:$0xff]
        %vm567 = vcmask 1045504
        %v568 = vrot.slane %v290, 2
        %v569 = vrot.slane %v291, 2
        %v570 = vsel %vm567, %v568, %v569
        %v571 = vrot.slane %v292, 2
        %v572 = vsel %vm567, %v569, %v571
        %v573 = vrot.slane %v293, 2
        %v574 = vsel %vm567, %v571, %v573
        %v575 = vrot.slane %v294, 2
        %v576 = vsel %vm567, %v573, %v575
        %v577 = vsel %vm351, %v570, 0
        %v579 = vsel %vm351, %v572, 0
        %v581 = vsel %vm351, %v574, 0
        %v583 = vsel %vm351, %v576, 0
        %585 = vmatprep.subr.mxu0 %v548
        %586 = vmatpush1.msra.mxu0 %v547
        %587 = vmatprep.subr.mxu0 %v550
        %588 = vmatpush1.msra.mxu0 %v549
        %589 = vmatprep.subr.mxu0 %v552
        %590 = vmatpush1.msra.mxu0 %v551
        %591 = vmatprep.subr.mxu0 %v554
        %592 = vmatpush1.msra.mxu0 %v553
        %593 = vmatprep.subr.mxu0 %v556
        %594 = vmatpush1.msra.mxu0 %v555
        %595 = vmatprep.subr.mxu0 %v558
        %596 = vmatpush1.msra.mxu0 %v557
        %597 = vmatprep.subr.mxu0 %v560
        %598 = vmatpush1.msra.mxu0 %v559
        %599 = vmatprep.subr.mxu0 %v562
        %600 = vmatpush1.msra.mxu0 %v561
        %601 = vmatprep.subr.mxu0 %v564
        %602 = vmatpush1.msra.mxu0 %v563
        %603 = vmatprep.subr.mxu0 %v566
        %604 = vmatpush1.msra.mxu0 %v565
        %605 = vmatprep.subr.mxu0 0.0
        %606 = vmatpush1.msra.mxu0 0.0
        %607 = vmatprep.subr.mxu0 0.0
        %608 = vmatpush1.msra.mxu0 0.0
        %609 = vmatprep.subr.mxu0 0.0
        %610 = vmatpush1.msra.mxu0 0.0
        %611 = vmatprep.subr.mxu0 0.0
        %612 = vmatpush1.msra.mxu0 0.0
        %613 = vmatprep.subr.mxu0 0.0
        %614 = vmatpush1.msra.mxu0 0.0
        %615 = vmatprep.subr.mxu0 0.0
        %616 = vmatpush1.msra.mxu0 0.0
        %617 = vmatprep.subr.mxu0 0.0
        %618 = vmatpush1.msra.mxu0 0.0
        %619 = vmatprep.subr.mxu0 0.0
        %620 = vmatpush1.msra.mxu0 0.0
        %621 = vmatprep.subr.mxu0 0.0
        %622 = vmatpush1.msra.mxu0 0.0
        %623 = vmatprep.subr.mxu0 0.0
        %624 = vmatpush1.msra.mxu0 0.0
        %625 = vmatprep.subr.mxu0 0.0
        %626 = vmatpush1.msra.mxu0 0.0
        %627 = vmatprep.subr.mxu0 0.0
        %628 = vmatpush1.msra.mxu0 0.0
        %629 = vmatprep.subr.mxu0 0.0
        %630 = vmatpush1.msra.mxu0 0.0
        %631 = vmatprep.subr.mxu0 0.0
        %632 = vmatpush1.msra.mxu0 0.0
        %633 = vmatprep.subr.mxu0 0.0
        %634 = vmatpush1.msra.mxu0 0.0
        %635 = vmatprep.subr.mxu0 0.0
        %636 = vmatpush1.msra.mxu0 0.0
        %637 = vmatprep.subr.mxu0 0.0
        %638 = vmatpush1.msra.mxu0 0.0
        %639 = vmatprep.subr.mxu0 0.0
        %640 = vmatpush1.msra.mxu0 0.0
        %641 = vmatprep.subr.mxu0 0.0
        %642 = vmatpush1.msra.mxu0 0.0
        %643 = vmatprep.subr.mxu0 0.0
        %644 = vmatpush1.msra.mxu0 0.0
        %645 = vmatprep.subr.mxu0 0.0
        %646 = vmatpush1.msra.mxu0 0.0
        %647 = vmatprep.subr.mxu0 0.0
        %648 = vmatpush1.msra.mxu0 0.0
        %649 = vmatprep.mubr.f32.mxu0 0.0
        %650 = vmatmul.mubr.f32.gmra.mrb[0].mxu0 %v577
        %v651 = vpop.f32.mrb[0].mxu0
        %v652 = vadd.f32 0.0, %v651
        %v653 = vpop.f32.mrb[0].mxu0
        %v654 = vadd.f32 0.0, %v653
        %655 = vmatprep.mubr.f32.mxu0 0.0
        %656 = vmatmul.mubr.f32.gmra.mrb[0].mxu0 %v579
        %v657 = vpop.f32.mrb[0].mxu0
        %v658 = vadd.f32 0.0, %v657
        %v659 = vpop.f32.mrb[0].mxu0
        %v660 = vadd.f32 0.0, %v659
        %661 = vmatprep.mubr.f32.mxu0 0.0
        %662 = vmatmul.mubr.f32.gmra.mrb[0].mxu0 %v581
        %v663 = vpop.f32.mrb[0].mxu0
        %v664 = vadd.f32 0.0, %v663
        %v665 = vpop.f32.mrb[0].mxu0
        %v666 = vadd.f32 0.0, %v665
        %667 = vmatprep.mubr.f32.mxu0 0.0
        %668 = vmatmul.mubr.f32.gmra.mrb[0].mxu0 %v583
        %v669 = vpop.f32.mrb[0].mxu0
        %v670 = vadd.f32 0.0, %v669
        %v671 = vpop.f32.mrb[0].mxu0
        %v672 = vadd.f32 0.0, %v671
        %673 = vdwg.mxu0
        %v674 = vadd.f32 %v524, %v652
        %v675 = vadd.f32 %v526, %v654
        %v676 = vadd.f32 %v530, %v658
        %v677 = vadd.f32 %v532, %v660
        %v678 = vadd.f32 %v536, %v664
        %v679 = vadd.f32 %v538, %v666
        %v680 = vadd.f32 %v542, %v670
        %v681 = vadd.f32 %v544, %v672
        %s682 = scalar_lea.vmem %s235, 480 [#allocation2]
        %v683 = vld [vmem:[%s682] sm:$0xff]
        %v684 = vld [vmem:[%s682 + $0x8] sm:$0xff]
        %v685 = vld [vmem:[%s682 + $0x10] sm:$0xff]
        %v686 = vld [vmem:[%s682 + $0x18] sm:$0xff]
        %v687 = vld [vmem:[%s682 + $0x20] sm:$0xff]
        %v688 = vld [vmem:[%s682 + $0x28] sm:$0xff]
        %v689 = vld [vmem:[%s682 + $0x30] sm:$0xff]
        %v690 = vld [vmem:[%s682 + $0x38] sm:$0xff]
        %v691 = vld [vmem:[%s682 + $0x40] sm:$0xff]
        %v692 = vld [vmem:[%s682 + $0x48] sm:$0xff]
        %v693 = vld [vmem:[%s682 + $0x50] sm:$0xff]
        %v694 = vld [vmem:[%s682 + $0x58] sm:$0xff]
        %v695 = vld [vmem:[%s682 + $0x60] sm:$0xff]
        %v696 = vld [vmem:[%s682 + $0x68] sm:$0xff]
        %v697 = vld [vmem:[%s682 + $0x70] sm:$0xff]
        %v698 = vld [vmem:[%s682 + $0x78] sm:$0xff]
        %v699 = vld [vmem:[%s682 + $0x80] sm:$0xff]
        %v700 = vld [vmem:[%s682 + $0x88] sm:$0xff]
        %v701 = vld [vmem:[%s682 + $0x90] sm:$0xff]
        %v702 = vld [vmem:[%s682 + $0x98] sm:$0xff]
        %vm703 = vcmask 1044480
        %v704 = vrot.slane %v290, 3
        %v705 = vrot.slane %v291, 3
        %v706 = vsel %vm703, %v704, %v705
        %v707 = vrot.slane %v292, 3
        %v708 = vsel %vm703, %v705, %v707
        %v709 = vrot.slane %v293, 3
        %v710 = vsel %vm703, %v707, %v709
        %v711 = vrot.slane %v294, 3
        %v712 = vsel %vm703, %v709, %v711
        %v713 = vsel %vm351, %v706, 0
        %v715 = vsel %vm351, %v708, 0
        %v717 = vsel %vm351, %v710, 0
        %v719 = vsel %vm351, %v712, 0
        %721 = vmatprep.subr.mxu0 %v684
        %722 = vmatpush1.msra.mxu0 %v683
        %723 = vmatprep.subr.mxu0 %v686
        %724 = vmatpush1.msra.mxu0 %v685
        %725 = vmatprep.subr.mxu0 %v688
        %726 = vmatpush1.msra.mxu0 %v687
        %727 = vmatprep.subr.mxu0 %v690
        %728 = vmatpush1.msra.mxu0 %v689
        %729 = vmatprep.subr.mxu0 %v692
        %730 = vmatpush1.msra.mxu0 %v691
        %731 = vmatprep.subr.mxu0 %v694
        %732 = vmatpush1.msra.mxu0 %v693
        %733 = vmatprep.subr.mxu0 %v696
        %734 = vmatpush1.msra.mxu0 %v695
        %735 = vmatprep.subr.mxu0 %v698
        %736 = vmatpush1.msra.mxu0 %v697
        %737 = vmatprep.subr.mxu0 %v700
        %738 = vmatpush1.msra.mxu0 %v699
        %739 = vmatprep.subr.mxu0 %v702
        %740 = vmatpush1.msra.mxu0 %v701
        %741 = vmatprep.subr.mxu0 0.0
        %742 = vmatpush1.msra.mxu0 0.0
        %743 = vmatprep.subr.mxu0 0.0
        %744 = vmatpush1.msra.mxu0 0.0
        %745 = vmatprep.subr.mxu0 0.0
        %746 = vmatpush1.msra.mxu0 0.0
        %747 = vmatprep.subr.mxu0 0.0
        %748 = vmatpush1.msra.mxu0 0.0
        %749 = vmatprep.subr.mxu0 0.0
        %750 = vmatpush1.msra.mxu0 0.0
        %751 = vmatprep.subr.mxu0 0.0
        %752 = vmatpush1.msra.mxu0 0.0
        %753 = vmatprep.subr.mxu0 0.0
        %754 = vmatpush1.msra.mxu0 0.0
        %755 = vmatprep.subr.mxu0 0.0
        %756 = vmatpush1.msra.mxu0 0.0
        %757 = vmatprep.subr.mxu0 0.0
        %758 = vmatpush1.msra.mxu0 0.0
        %759 = vmatprep.subr.mxu0 0.0
        %760 = vmatpush1.msra.mxu0 0.0
        %761 = vmatprep.subr.mxu0 0.0
        %762 = vmatpush1.msra.mxu0 0.0
        %763 = vmatprep.subr.mxu0 0.0
        %764 = vmatpush1.msra.mxu0 0.0
        %765 = vmatprep.subr.mxu0 0.0
        %766 = vmatpush1.msra.mxu0 0.0
        %767 = vmatprep.subr.mxu0 0.0
        %768 = vmatpush1.msra.mxu0 0.0
        %769 = vmatprep.subr.mxu0 0.0
        %770 = vmatpush1.msra.mxu0 0.0
        %771 = vmatprep.subr.mxu0 0.0
        %772 = vmatpush1.msra.mxu0 0.0
        %773 = vmatprep.subr.mxu0 0.0
        %774 = vmatpush1.msra.mxu0 0.0
        %775 = vmatprep.subr.mxu0 0.0
        %776 = vmatpush1.msra.mxu0 0.0
        %777 = vmatprep.subr.mxu0 0.0
        %778 = vmatpush1.msra.mxu0 0.0
        %779 = vmatprep.subr.mxu0 0.0
        %780 = vmatpush1.msra.mxu0 0.0
        %781 = vmatprep.subr.mxu0 0.0
        %782 = vmatpush1.msra.mxu0 0.0
        %783 = vmatprep.subr.mxu0 0.0
        %784 = vmatpush1.msra.mxu0 0.0
        %785 = vmatprep.mubr.f32.mxu0 0.0
        %786 = vmatmul.mubr.f32.gmra.mrb[0].mxu0 %v713
        %v787 = vpop.f32.mrb[0].mxu0
        %v788 = vadd.f32 0.0, %v787
        %v789 = vpop.f32.mrb[0].mxu0
        %v790 = vadd.f32 0.0, %v789
        %791 = vmatprep.mubr.f32.mxu0 0.0
        %792 = vmatmul.mubr.f32.gmra.mrb[0].mxu0 %v715
        %v793 = vpop.f32.mrb[0].mxu0
        %v794 = vadd.f32 0.0, %v793
        %v795 = vpop.f32.mrb[0].mxu0
        %v796 = vadd.f32 0.0, %v795
        %797 = vmatprep.mubr.f32.mxu0 0.0
        %798 = vmatmul.mubr.f32.gmra.mrb[0].mxu0 %v717
        %v799 = vpop.f32.mrb[0].mxu0
        %v800 = vadd.f32 0.0, %v799
        %v801 = vpop.f32.mrb[0].mxu0
        %v802 = vadd.f32 0.0, %v801
        %803 = vmatprep.mubr.f32.mxu0 0.0
        %804 = vmatmul.mubr.f32.gmra.mrb[0].mxu0 %v719
        %v805 = vpop.f32.mrb[0].mxu0
        %v806 = vadd.f32 0.0, %v805
        %v807 = vpop.f32.mrb[0].mxu0
        %v808 = vadd.f32 0.0, %v807
        %809 = vdwg.mxu0
        %v810 = vadd.f32 %v674, %v788
        %v811 = vadd.f32 %v675, %v790
        %v812 = vadd.f32 %v676, %v794
        %v813 = vadd.f32 %v677, %v796
        %v814 = vadd.f32 %v678, %v800
        %v815 = vadd.f32 %v679, %v802
        %v816 = vadd.f32 %v680, %v806
        %v817 = vadd.f32 %v681, %v808
        %s818 = scalar_lea.vmem %s235, 640 [#allocation2]
        %v819 = vld [vmem:[%s818] sm:$0xff]
        %v820 = vld [vmem:[%s818 + $0x8] sm:$0xff]
        %v821 = vld [vmem:[%s818 + $0x10] sm:$0xff]
        %v822 = vld [vmem:[%s818 + $0x18] sm:$0xff]
        %v823 = vld [vmem:[%s818 + $0x20] sm:$0xff]
        %v824 = vld [vmem:[%s818 + $0x28] sm:$0xff]
        %v825 = vld [vmem:[%s818 + $0x30] sm:$0xff]
        %v826 = vld [vmem:[%s818 + $0x38] sm:$0xff]
        %v827 = vld [vmem:[%s818 + $0x40] sm:$0xff]
        %v828 = vld [vmem:[%s818 + $0x48] sm:$0xff]
        %v829 = vld [vmem:[%s818 + $0x50] sm:$0xff]
        %v830 = vld [vmem:[%s818 + $0x58] sm:$0xff]
        %v831 = vld [vmem:[%s818 + $0x60] sm:$0xff]
        %v832 = vld [vmem:[%s818 + $0x68] sm:$0xff]
        %v833 = vld [vmem:[%s818 + $0x70] sm:$0xff]
        %v834 = vld [vmem:[%s818 + $0x78] sm:$0xff]
        %v835 = vld [vmem:[%s818 + $0x80] sm:$0xff]
        %v836 = vld [vmem:[%s818 + $0x88] sm:$0xff]
        %v837 = vld [vmem:[%s818 + $0x90] sm:$0xff]
        %v838 = vld [vmem:[%s818 + $0x98] sm:$0xff]
        %vm839 = vcmask 1043456
        %v840 = vrot.slane %v290, 4
        %v841 = vrot.slane %v291, 4
        %v842 = vsel %vm839, %v840, %v841
        %v843 = vrot.slane %v292, 4
        %v844 = vsel %vm839, %v841, %v843
        %v845 = vrot.slane %v293, 4
        %v846 = vsel %vm839, %v843, %v845
        %v847 = vrot.slane %v294, 4
        %v848 = vsel %vm839, %v845, %v847
        %v849 = vsel %vm351, %v842, 0
        %v851 = vsel %vm351, %v844, 0
        %v853 = vsel %vm351, %v846, 0
        %v855 = vsel %vm351, %v848, 0
        %857 = vmatprep.subr.mxu0 %v820
        %858 = vmatpush1.msra.mxu0 %v819
        %859 = vmatprep.subr.mxu0 %v822
        %860 = vmatpush1.msra.mxu0 %v821
        %861 = vmatprep.subr.mxu0 %v824
        %862 = vmatpush1.msra.mxu0 %v823
        %863 = vmatprep.subr.mxu0 %v826
        %864 = vmatpush1.msra.mxu0 %v825
        %865 = vmatprep.subr.mxu0 %v828
        %866 = vmatpush1.msra.mxu0 %v827
        %867 = vmatprep.subr.mxu0 %v830
        %868 = vmatpush1.msra.mxu0 %v829
        %869 = vmatprep.subr.mxu0 %v832
        %870 = vmatpush1.msra.mxu0 %v831
        %871 = vmatprep.subr.mxu0 %v834
        %872 = vmatpush1.msra.mxu0 %v833
        %873 = vmatprep.subr.mxu0 %v836
        %874 = vmatpush1.msra.mxu0 %v835
        %875 = vmatprep.subr.mxu0 %v838
        %876 = vmatpush1.msra.mxu0 %v837
        %877 = vmatprep.subr.mxu0 0.0
        %878 = vmatpush1.msra.mxu0 0.0
        %879 = vmatprep.subr.mxu0 0.0
        %880 = vmatpush1.msra.mxu0 0.0
        %881 = vmatprep.subr.mxu0 0.0
        %882 = vmatpush1.msra.mxu0 0.0
        %883 = vmatprep.subr.mxu0 0.0
        %884 = vmatpush1.msra.mxu0 0.0
        %885 = vmatprep.subr.mxu0 0.0
        %886 = vmatpush1.msra.mxu0 0.0
        %887 = vmatprep.subr.mxu0 0.0
        %888 = vmatpush1.msra.mxu0 0.0
        %889 = vmatprep.subr.mxu0 0.0
        %890 = vmatpush1.msra.mxu0 0.0
        %891 = vmatprep.subr.mxu0 0.0
        %892 = vmatpush1.msra.mxu0 0.0
        %893 = vmatprep.subr.mxu0 0.0
        %894 = vmatpush1.msra.mxu0 0.0
        %895 = vmatprep.subr.mxu0 0.0
        %896 = vmatpush1.msra.mxu0 0.0
        %897 = vmatprep.subr.mxu0 0.0
        %898 = vmatpush1.msra.mxu0 0.0
        %899 = vmatprep.subr.mxu0 0.0
        %900 = vmatpush1.msra.mxu0 0.0
        %901 = vmatprep.subr.mxu0 0.0
        %902 = vmatpush1.msra.mxu0 0.0
        %903 = vmatprep.subr.mxu0 0.0
        %904 = vmatpush1.msra.mxu0 0.0
        %905 = vmatprep.subr.mxu0 0.0
        %906 = vmatpush1.msra.mxu0 0.0
        %907 = vmatprep.subr.mxu0 0.0
        %908 = vmatpush1.msra.mxu0 0.0
        %909 = vmatprep.subr.mxu0 0.0
        %910 = vmatpush1.msra.mxu0 0.0
        %911 = vmatprep.subr.mxu0 0.0
        %912 = vmatpush1.msra.mxu0 0.0
        %913 = vmatprep.subr.mxu0 0.0
        %914 = vmatpush1.msra.mxu0 0.0
        %915 = vmatprep.subr.mxu0 0.0
        %916 = vmatpush1.msra.mxu0 0.0
        %917 = vmatprep.subr.mxu0 0.0
        %918 = vmatpush1.msra.mxu0 0.0
        %919 = vmatprep.subr.mxu0 0.0
        %920 = vmatpush1.msra.mxu0 0.0
        %921 = vmatprep.mubr.f32.mxu0 0.0
        %922 = vmatmul.mubr.f32.gmra.mrb[0].mxu0 %v849
        %v923 = vpop.f32.mrb[0].mxu0
        %v924 = vadd.f32 0.0, %v923
        %v925 = vpop.f32.mrb[0].mxu0
        %v926 = vadd.f32 0.0, %v925
        %927 = vmatprep.mubr.f32.mxu0 0.0
        %928 = vmatmul.mubr.f32.gmra.mrb[0].mxu0 %v851
        %v929 = vpop.f32.mrb[0].mxu0
        %v930 = vadd.f32 0.0, %v929
        %v931 = vpop.f32.mrb[0].mxu0
        %v932 = vadd.f32 0.0, %v931
        %933 = vmatprep.mubr.f32.mxu0 0.0
        %934 = vmatmul.mubr.f32.gmra.mrb[0].mxu0 %v853
        %v935 = vpop.f32.mrb[0].mxu0
        %v936 = vadd.f32 0.0, %v935
        %v937 = vpop.f32.mrb[0].mxu0
        %v938 = vadd.f32 0.0, %v937
        %939 = vmatprep.mubr.f32.mxu0 0.0
        %940 = vmatmul.mubr.f32.gmra.mrb[0].mxu0 %v855
        %v941 = vpop.f32.mrb[0].mxu0
        %v942 = vadd.f32 0.0, %v941
        %v943 = vpop.f32.mrb[0].mxu0
        %v944 = vadd.f32 0.0, %v943
        %945 = vdwg.mxu0
        %v946 = vadd.f32 %v810, %v924
        %v947 = vadd.f32 %v811, %v926
        %v948 = vadd.f32 %v812, %v930
        %v949 = vadd.f32 %v813, %v932
        %v950 = vadd.f32 %v814, %v936
        %v951 = vadd.f32 %v815, %v938
        %v952 = vadd.f32 %v816, %v942
        %v953 = vadd.f32 %v817, %v944
        %v954 = vld [vmem:[%s282] sm:$0x3]
        %v956 = vlaneseq
        %v957 = vshrl.u32 %v956, 7
        %v958 = vsub.s32 0, %v957
        %v959 = vrot.slane %v954, %v958
        %v960 = vlaneseq
        %v961 = vshrl.u32 %v960, 7
        %v962 = vsub.s32 1, %v961
        %v963 = vrot.slane %v954, %v962
        %v966 = vmul.f32 %v946, %v959
        %v967 = vmul.f32 %v947, %v963
        %v968 = vmul.f32 %v948, %v959
        %v969 = vmul.f32 %v949, %v963
        %v970 = vmul.f32 %v950, %v959
        %v971 = vmul.f32 %v951, %v963
        %v972 = vmul.f32 %v952, %v959
        %v973 = vmul.f32 %v953, %v963
        %v974 = vld [vmem:[%s287] sm:$0x3]
        %v976 = vlaneseq
        %v977 = vshrl.u32 %v976, 7
        %v978 = vsub.s32 0, %v977
        %v979 = vrot.slane %v974, %v978
        %v980 = vlaneseq
        %v981 = vshrl.u32 %v980, 7
        %v982 = vsub.s32 1, %v981
        %v983 = vrot.slane %v974, %v982
        %v986 = vadd.f32 %v966, %v979
        %v987 = vadd.f32 %v967, %v983
        %v988 = vadd.f32 %v968, %v979
        %v989 = vadd.f32 %v969, %v983
        %v990 = vadd.f32 %v970, %v979
        %v991 = vadd.f32 %v971, %v983
        %v992 = vadd.f32 %v972, %v979
        %v993 = vadd.f32 %v973, %v983
        %v994 = vtanh.pop %v986
        %v995 = vtanh.pop %v987
        %v996 = vtanh.pop %v988
        %v997 = vtanh.pop %v989
        %v998 = vtanh.pop %v990
        %v999 = vtanh.pop %v991
        %v1000 = vtanh.pop %v992
        %v1001 = vtanh.pop %v993
        %1002 = vst [vmem:[%s272] sm:$0xff] %v994
        %1003 = vst [vmem:[%s272 + $0x8] sm:$0xff] %v995
        %1004 = vst [vmem:[%s272 + $0x10] sm:$0xff] %v996
        %1005 = vst [vmem:[%s272 + $0x18] sm:$0xff] %v997
        %1006 = vst [vmem:[%s272 + $0x20] sm:$0xff] %v998
        %1007 = vst [vmem:[%s272 + $0x28] sm:$0xff] %v999
        %1008 = vst [vmem:[%s272 + $0x30] sm:$0xff] %v1000
        %1009 = vst [vmem:[%s272 + $0x38] sm:$0xff] %v1001
        %s1010 = sand.u32 %s147, 1
        %s1011 = scalar_lea.sflag [#allocation4], %s1010
        %s1012 = sand.u32 %s147, 1
        %s1013 = smul.addr %s1012, 64
        %s1014 = scalar_lea.vmem [#allocation5], %s1013
        // Predicated region
        $region41: #{tpu_custom_call.1} parent=35 // pred_check
          %p1015 = pneg %p157
        $region42: #{tpu_custom_call.1} parent=35 // pred_check_branch
          %1017 = sbr.rel (%p1015) target = $region44
        $region43: #{tpu_custom_call.1} parent=35 // pred_region
          %s1018 = smul.u32 2, %s26
          %s1020 = ssub.s32 1024, 1024
          %1021 = vsyncadd %s1011, %s1020
          %s1022 = smul.addr %s25, 16
          %s1023 = sadd.s32 %s1018, %s1022
          %s1024 = smul.addr %s1023, 128
          %s1025 = scalar_lea.hbm %s4, %s1024
          %s1026 = sshll.u32 %s1014, 4
          %s1027 = int_to_ptr.vmem [resolvable:$true] %s1026
          %1032 = dma.vmem_to_hbm [thread:$0]  %s1027, 1024, %s1025, %s1011, 256, 512, 16
        $region44: #{tpu_custom_call.1} parent=35 // pred_fallthru
          _
      $region36: #{tpu_custom_call.1} parent=5 // pred_fallthru
        _
      %p1033 = scmp.le.s32.totalorder 2, %s16
      // Predicated region
      $region45: #{tpu_custom_call.1} parent=5 // pred_check
        %p1034 = pneg %p1033
      $region46: #{tpu_custom_call.1} parent=5 // pred_check_branch
        %1036 = sbr.rel (%p1034) target = $region48
      $region47: #{tpu_custom_call.1} parent=5 // pred_region
        %s1037 = ssub.s32 %s16, 2
        // Predicated region
        $region49: #{tpu_custom_call.1} parent=47 // pred_check
          %p1038 = pneg %p163
        $region50: #{tpu_custom_call.1} parent=47 // pred_check_branch
          %1040 = sbr.rel (%p1038) target = $region52
        $region51: #{tpu_custom_call.1} parent=47 // pred_region
          %s1041 = sand.u32 %s148, 1
          %s1042 = scalar_lea.sflag [#allocation4], %s1041
          %s1043 = sand.u32 %s148, 1
          %s1044 = smul.addr %s1043, 64
          %s1045 = scalar_lea.vmem [#allocation5], %s1044
          %1046 = dma.done %s1042, 1024
        $region52: #{tpu_custom_call.1} parent=47 // pred_fallthru
          _
      $region48: #{tpu_custom_call.1} parent=5 // pred_fallthru
        _
    $region6: #{tpu_custom_call.1} parent=1 // loop_footer
      %s20 = sadd.s32 1, %s16
    $region7: #{tpu_custom_call.1} parent=1 // loop_footer_branch
      %15 = sbr.rel target = $region3
    $region8: #{tpu_custom_call.1} parent=1 // loop_exit
      _
    %1047 = vsyncpa [#allocation3], 1
    %s1048 = scalar_lea.sflag [#allocation3], 1
    %1049 = vsyncpa %s1048, 1
    %1050 = vsyncpa [#allocation4], 1
    %s1051 = scalar_lea.sflag [#allocation4], 1
    %1052 = vsyncpa %s1051, 1

</llo_original>
